<compile_context>
chip_gen: v5e
topology: v5e:2x2
jax: 0.10.0
libtpu: 0.0.40
codegen_flags: <defaults>
</compile_context>

<pallas_src>
import functools

import jax
import jax.numpy as jnp
from jax.experimental import pallas as pl
from jax.experimental.pallas import tpu as pltpu


def _round_up(x: int, m: int) -> int:
    return ((x + m - 1) // m) * m


def _gumbel_softmax_kernel(x_ref, w_ref, b_ref, u_ref,
                           logits_ref, prob_ref, y_ref,
                           *, temperature: float):
    # x_ref: (tm, f_dim), w_ref: (f_dim, c_dim), b_ref: (1, c_dim), u_ref: (tm, c_dim)
    x = x_ref[...]
    w = w_ref[...]
    b = b_ref[...]

    # Linear layer (MXU): logits = x @ W + b
    logits = jnp.dot(x, w, preferred_element_type=jnp.float32) + b
    logits_ref[...] = logits.astype(logits_ref.dtype)

    # prob = softmax(logits, dim=-1)  (numerically stable; EUP approx reciprocal
    # instead of a VALU divide)
    m = jnp.max(logits, axis=-1, keepdims=True)
    e = jnp.exp(logits - m)
    inv = pl.reciprocal(jnp.sum(e, axis=-1, keepdims=True), approx=True)
    prob_ref[...] = (e * inv).astype(prob_ref.dtype)

    # Gumbel-softmax sample (hard=False default path):
    #   g = -log(-log(U + eps) + eps);  y = softmax((logits + g) / temperature)
    eps = 1e-20
    g = -jnp.log(-jnp.log(u_ref[...] + eps) + eps)
    yl = (logits + g) * (1.0 / temperature)
    m2 = jnp.max(yl, axis=-1, keepdims=True)
    e2 = jnp.exp(yl - m2)
    inv2 = pl.reciprocal(jnp.sum(e2, axis=-1, keepdims=True), approx=True)
    y_ref[...] = (e2 * inv2).astype(y_ref.dtype)


def gumbel_softmax_forward(x, W, b, U, temperature=1.0, tm=None):
    """x:(B,f_dim)  W:(f_dim,c_dim)  b:(c_dim,)  U:(B,c_dim) uniform(0,1) noise.

    Returns (logits, prob, y), each (B, c_dim) float32.
    """
    B, f_dim = x.shape
    c_dim = W.shape[1]

    # ---- Tile selection: large row tiles to amortize per-step overhead. ----
    # Per-row VMEM footprint is only ~(f_dim + 4*c_dim)*4 bytes (x2 for double
    # buffering), so a few thousand rows fits comfortably inside even the v5e
    # 16 MiB scoped-VMEM default for these feature widths.
    if tm is None:
        tm = min(_round_up(max(B, 1), 8), 4096)
    tm = max(8, _round_up(tm, 8))

    # Pad the batch to a tile multiple instead of asserting divisibility; the
    # padded rows compute garbage softmaxes that are sliced off afterwards.
    Bp = _round_up(max(B, 1), tm)
    if Bp != B:
        pad = Bp - B
        x = jnp.pad(x, ((0, pad), (0, 0)))
        U = jnp.pad(U, ((0, pad), (0, 0)), constant_values=0.5)

    b2 = b.reshape(1, c_dim)

    kernel = functools.partial(_gumbel_softmax_kernel, temperature=float(temperature))

    out_shapes = (
        jax.ShapeDtypeStruct((Bp, c_dim), jnp.float32),  # logits
        jax.ShapeDtypeStruct((Bp, c_dim), jnp.float32),  # prob
        jax.ShapeDtypeStruct((Bp, c_dim), jnp.float32),  # y
    )

    grid_spec = pltpu.PrefetchScalarGridSpec(
        num_scalar_prefetch=0,
        grid=(Bp // tm,),
        in_specs=[
            pl.BlockSpec((tm, f_dim), lambda i: (i, 0)),     # x tile
            pl.BlockSpec((f_dim, c_dim), lambda i: (0, 0)),  # full weight (resident)
            pl.BlockSpec((1, c_dim), lambda i: (0, 0)),      # bias (resident)
            pl.BlockSpec((tm, c_dim), lambda i: (i, 0)),     # uniform noise tile
        ],
        out_specs=[
            pl.BlockSpec((tm, c_dim), lambda i: (i, 0)),
            pl.BlockSpec((tm, c_dim), lambda i: (i, 0)),
            pl.BlockSpec((tm, c_dim), lambda i: (i, 0)),
        ],
    )

    logits, prob, y = pl.pallas_call(
        kernel,
        out_shape=out_shapes,
        grid_spec=grid_spec,
        compiler_params=pltpu.CompilerParams(
            # batch axis is embarrassingly parallel -> lets v7x shard it over
            # both TensorCores; neutral on v5e/v6e.
            dimension_semantics=("parallel",),
        ),
    )(x, W, b2, U)

    if Bp != B:
        logits, prob, y = logits[:B], prob[:B], y[:B]
    return logits, prob, y


def _reference(x, W, b, U, temperature=1.0):
    logits = x @ W + b[None, :]
    prob = jax.nn.softmax(logits, axis=-1)
    eps = 1e-20
    g = -jnp.log(-jnp.log(U + eps) + eps)
    y = jax.nn.softmax((logits + g) / temperature, axis=-1)
    return logits, prob, y


if __name__ == "__main__":
    # Small shapes consistent with the module: batch=16, f_dim=32, c_dim=8.
    B, f_dim, c_dim = 16, 32, 8
    temperature = 1.0

    key = jax.random.PRNGKey(0)
    kx, kw, kb, ku = jax.random.split(key, 4)

    # Deterministic parameter init mimicking nn.Linear default (uniform +/- 1/sqrt(fan_in)).
    bound = 1.0 / (f_dim ** 0.5)
    W = jax.random.uniform(kw, (f_dim, c_dim), jnp.float32, -bound, bound)
    bias = jax.random.uniform(kb, (c_dim,), jnp.float32, -bound, bound)

    x = jax.random.normal(kx, (B, f_dim), jnp.float32)
    # Uniform noise for the Gumbel sample (equivalent of torch.rand).
    U = jax.random.uniform(ku, (B, c_dim), jnp.float32)

    logits, prob, y = gumbel_softmax_forward(x, W, bias, U, temperature=temperature)
    jax.block_until_ready((logits, prob, y))

    # Sanity check against a pure-JAX reference (slightly loose tolerance on the
    # softmax outputs because of the EUP approximate reciprocal).
    ref_logits, ref_prob, ref_y = _reference(x, W, bias, U, temperature)
    assert jnp.allclose(logits, ref_logits, rtol=1e-4, atol=1e-5)
    assert jnp.allclose(prob, ref_prob, rtol=1e-2, atol=2e-3)
    assert jnp.allclose(y, ref_y, rtol=1e-2, atol=2e-3)

    # TODO(synk): the `hard=True` straight-through (argmax one-hot scatter) branch
    # is not exercised by forward() defaults and is omitted.
    print("KERNEL_OK")
</pallas_src>

<mosaic_0001>
module attributes {stable_mosaic.version = 11 : i64} {
  func.func @_gumbel_softmax_kernel(%arg0: i32, %arg1: memref<16x32xf32, #tpu.memory_space<vmem>>, %arg2: memref<32x8xf32, #tpu.memory_space<vmem>>, %arg3: memref<1x8xf32, #tpu.memory_space<vmem>>, %arg4: memref<16x8xf32, #tpu.memory_space<vmem>>, %arg5: memref<16x8xf32, #tpu.memory_space<vmem>>, %arg6: memref<16x8xf32, #tpu.memory_space<vmem>>, %arg7: memref<16x8xf32, #tpu.memory_space<vmem>>) attributes {dimension_semantics = [#tpu.dimension_semantics<parallel>], iteration_bounds = array<i64: 1>, scalar_prefetch = 0 : i64, scratch_operands = 0 : i64, tpu.core_type = #tpu.core_type<tc>, window_params = [{transform_indices = @transform_0, window_bounds = array<i64: 16, 32>}, {pipeline_mode = #tpu.pipeline_mode<synchronous>, transform_indices = @transform_1, window_bounds = array<i64: 32, 8>}, {pipeline_mode = #tpu.pipeline_mode<synchronous>, transform_indices = @transform_2, window_bounds = array<i64: 1, 8>}, {transform_indices = @transform_3, window_bounds = array<i64: 16, 8>}, {transform_indices = @transform_4, window_bounds = array<i64: 16, 8>}, {transform_indices = @transform_5, window_bounds = array<i64: 16, 8>}, {transform_indices = @transform_6, window_bounds = array<i64: 16, 8>}]} {
    %c0 = arith.constant 0 : index
    %c0_0 = arith.constant 0 : index
    %0 = vector.load %arg1[%c0, %c0_0] : memref<16x32xf32, #tpu.memory_space<vmem>>, vector<16x32xf32>
    %c0_1 = arith.constant 0 : index
    %c0_2 = arith.constant 0 : index
    %1 = vector.load %arg2[%c0_1, %c0_2] : memref<32x8xf32, #tpu.memory_space<vmem>>, vector<32x8xf32>
    %c0_3 = arith.constant 0 : index
    %c0_4 = arith.constant 0 : index
    %2 = vector.load %arg3[%c0_3, %c0_4] : memref<1x8xf32, #tpu.memory_space<vmem>>, vector<1x8xf32>
    %cst = arith.constant dense<0.000000e+00> : vector<16x8xf32>
    %3 = tpu.matmul %0, %1, %cst {dimension_numbers = #tpu.dot_dimension_numbers<[1], [0], [0], [1], [0, 0, 1, 1], [], []>} : vector<16x32xf32>, vector<32x8xf32>, vector<16x8xf32> -> vector<16x8xf32>
    %4 = vector.broadcast %2 : vector<1x8xf32> to vector<16x8xf32>
    %5 = arith.addf %3, %4 : vector<16x8xf32>
    %c0_5 = arith.constant 0 : index
    %c0_6 = arith.constant 0 : index
    %6 = vector.load %arg5[%c0_5, %c0_6] : memref<16x8xf32, #tpu.memory_space<vmem>>, vector<16x8xf32>
    tpu.vector_store %arg5[%c0_5, %c0_6], %5 {strides = array<i32>} : memref<16x8xf32, #tpu.memory_space<vmem>>, vector<16x8xf32>,
    %cst_7 = arith.constant dense<0xFF800000> : vector<16xf32>
    %7 = vector.multi_reduction <maximumf>, %5, %cst_7 [1] : vector<16x8xf32> to vector<16xf32>
    %8 = vector.shape_cast %7 : vector<16xf32> to vector<16x1xf32>
    %9 = vector.broadcast %8 : vector<16x1xf32> to vector<16x8xf32>
    %10 = arith.subf %5, %9 : vector<16x8xf32>
    %11 = math.exp %10 : vector<16x8xf32>
    %cst_8 = arith.constant dense<0.000000e+00> : vector<16xf32>
    %12 = vector.multi_reduction <add>, %11, %cst_8 [1] : vector<16x8xf32> to vector<16xf32>
    %13 = vector.shape_cast %12 : vector<16xf32> to vector<16x1xf32>
    %14 = tpu.reciprocal %13 {approx = true} : vector<16x1xf32> -> vector<16x1xf32>
    %15 = vector.broadcast %14 : vector<16x1xf32> to vector<16x8xf32>
    %16 = arith.mulf %11, %15 : vector<16x8xf32>
    %c0_9 = arith.constant 0 : index
    %c0_10 = arith.constant 0 : index
    %17 = vector.load %arg6[%c0_9, %c0_10] : memref<16x8xf32, #tpu.memory_space<vmem>>, vector<16x8xf32>
    tpu.vector_store %arg6[%c0_9, %c0_10], %16 {strides = array<i32>} : memref<16x8xf32, #tpu.memory_space<vmem>>, vector<16x8xf32>,
    %c0_11 = arith.constant 0 : index
    %c0_12 = arith.constant 0 : index
    %18 = vector.load %arg4[%c0_11, %c0_12] : memref<16x8xf32, #tpu.memory_space<vmem>>, vector<16x8xf32>
    %cst_13 = arith.constant 9.99999968E-21 : f32
    %19 = vector.broadcast %cst_13 : f32 to vector<16x8xf32>
    %20 = arith.addf %18, %19 : vector<16x8xf32>
    %21 = math.log %20 : vector<16x8xf32>
    %cst_14 = arith.constant 0.000000e+00 : f32
    %22 = vector.broadcast %cst_14 : f32 to vector<16x8xf32>
    %23 = arith.subf %22, %21 : vector<16x8xf32>
    %cst_15 = arith.constant 9.99999968E-21 : f32
    %24 = vector.broadcast %cst_15 : f32 to vector<16x8xf32>
    %25 = arith.addf %23, %24 : vector<16x8xf32>
    %26 = math.log %25 : vector<16x8xf32>
    %cst_16 = arith.constant 0.000000e+00 : f32
    %27 = vector.broadcast %cst_16 : f32 to vector<16x8xf32>
    %28 = arith.subf %27, %26 : vector<16x8xf32>
    %29 = arith.addf %5, %28 : vector<16x8xf32>
    %cst_17 = arith.constant 1.000000e+00 : f32
    %30 = vector.broadcast %cst_17 : f32 to vector<16x8xf32>
    %31 = arith.mulf %29, %30 : vector<16x8xf32>
    %cst_18 = arith.constant dense<0xFF800000> : vector<16xf32>
    %32 = vector.multi_reduction <maximumf>, %31, %cst_18 [1] : vector<16x8xf32> to vector<16xf32>
    %33 = vector.shape_cast %32 : vector<16xf32> to vector<16x1xf32>
    %34 = vector.broadcast %33 : vector<16x1xf32> to vector<16x8xf32>
    %35 = arith.subf %31, %34 : vector<16x8xf32>
    %36 = math.exp %35 : vector<16x8xf32>
    %cst_19 = arith.constant dense<0.000000e+00> : vector<16xf32>
    %37 = vector.multi_reduction <add>, %36, %cst_19 [1] : vector<16x8xf32> to vector<16xf32>
    %38 = vector.shape_cast %37 : vector<16xf32> to vector<16x1xf32>
    %39 = tpu.reciprocal %38 {approx = true} : vector<16x1xf32> -> vector<16x1xf32>
    %40 = vector.broadcast %39 : vector<16x1xf32> to vector<16x8xf32>
    %41 = arith.mulf %36, %40 : vector<16x8xf32>
    %c0_20 = arith.constant 0 : index
    %c0_21 = arith.constant 0 : index
    %42 = vector.load %arg7[%c0_20, %c0_21] : memref<16x8xf32, #tpu.memory_space<vmem>>, vector<16x8xf32>
    tpu.vector_store %arg7[%c0_20, %c0_21], %41 {strides = array<i32>} : memref<16x8xf32, #tpu.memory_space<vmem>>, vector<16x8xf32>,
    return
  }
  func.func @transform_0(%arg0: i32) -> (i32, i32) {
    %c0_i32 = arith.constant 0 : i32
    %c0_i32_0 = arith.constant 0 : i32
    return %arg0, %c0_i32 : i32, i32
  }
  func.func @transform_1(%arg0: i32) -> (i32, i32) {
    %c0_i32 = arith.constant 0 : i32
    %c0_i32_0 = arith.constant 0 : i32
    %c0_i32_1 = arith.constant 0 : i32
    return %c0_i32, %c0_i32_0 : i32, i32
  }
  func.func @transform_2(%arg0: i32) -> (i32, i32) {
    %c0_i32 = arith.constant 0 : i32
    %c0_i32_0 = arith.constant 0 : i32
    %c0_i32_1 = arith.constant 0 : i32
    return %c0_i32, %c0_i32_0 : i32, i32
  }
  func.func @transform_3(%arg0: i32) -> (i32, i32) {
    %c0_i32 = arith.constant 0 : i32
    %c0_i32_0 = arith.constant 0 : i32
    return %arg0, %c0_i32 : i32, i32
  }
  func.func @transform_4(%arg0: i32) -> (i32, i32) {
    %c0_i32 = arith.constant 0 : i32
    %c0_i32_0 = arith.constant 0 : i32
    return %arg0, %c0_i32 : i32, i32
  }
  func.func @transform_5(%arg0: i32) -> (i32, i32) {
    %c0_i32 = arith.constant 0 : i32
    %c0_i32_0 = arith.constant 0 : i32
    return %arg0, %c0_i32 : i32, i32
  }
  func.func @transform_6(%arg0: i32) -> (i32, i32) {
    %c0_i32 = arith.constant 0 : i32
    %c0_i32_0 = arith.constant 0 : i32
    return %arg0, %c0_i32 : i32, i32
  }
}

</mosaic_0001>

<llo_original>
// kernel: tpu_custom_call.1
$region0: #{tpu_custom_call.1}
  #allocation0 [shape = 'u32[]', space=smem, size = 0x4, offset = 0x4, fixed_abs, tag = 'smem constant byte address 0x4 - core index']
  #allocation1 [shape = 'u32[72,128]{1,0:T(1,128)}', space=vmem, size = 0x9000, scoped, tag = 'internal scratch']
  %s0 = inlined_call_operand.vmem [shape: f32[16,32], index: 0, kind: input, shape index: {}]
  %s1 = inlined_call_operand.vmem [shape: f32[32,8], index: 1, kind: input, shape index: {}]
  %s2 = inlined_call_operand.vmem [shape: f32[1,8], index: 2, kind: input, shape index: {}]
  %s3 = inlined_call_operand.vmem [shape: f32[16,8], index: 3, kind: input, shape index: {}]
  %s4 = inlined_call_operand.vmem [shape: f32[16,8], index: 4, kind: output, shape index: {0}]
  %s5 = inlined_call_operand.vmem [shape: f32[16,8], index: 5, kind: output, shape index: {1}]
  %s6 = inlined_call_operand.vmem [shape: f32[16,8], index: 6, kind: output, shape index: {2}]
  %7 = xla_tuple %s4, %s5, %s6
  %s8 = sld [smem:[#allocation0]]
  $region42: #{tpu_custom_call.1} parent=0
    _
  %s10 = ssub.s32 1, %s8
  %s11 = scalar_select 0, %s10, %s8
  // Predicated region
  $region2: #{tpu_custom_call.1} parent=0 // pred_check
    _
  $region3: #{tpu_custom_call.1} parent=0 // pred_check_branch
    %13 = sbr.rel (0) target = $region5
  $region4: #{tpu_custom_call.1} parent=0 // pred_region
    _
  $region5: #{tpu_custom_call.1} parent=0 // pred_fallthru
    _
  // Predicated region
  $region6: #{tpu_custom_call.1} parent=0 // pred_check
    _
  $region7: #{tpu_custom_call.1} parent=0 // pred_check_branch
    %15 = sbr.rel (0) target = $region9
  $region8: #{tpu_custom_call.1} parent=0 // pred_region
    _
  $region9: #{tpu_custom_call.1} parent=0 // pred_fallthru
    _
  // Predicated region
  $region10: #{tpu_custom_call.1} parent=0 // pred_check
    _
  $region11: #{tpu_custom_call.1} parent=0 // pred_check_branch
    %17 = sbr.rel (0) target = $region13
  $region12: #{tpu_custom_call.1} parent=0 // pred_region
    _
  $region13: #{tpu_custom_call.1} parent=0 // pred_fallthru
    _
  // Predicated region
  $region14: #{tpu_custom_call.1} parent=0 // pred_check
    _
  $region15: #{tpu_custom_call.1} parent=0 // pred_check_branch
    %19 = sbr.rel (0) target = $region17
  $region16: #{tpu_custom_call.1} parent=0 // pred_region
    _
  $region17: #{tpu_custom_call.1} parent=0 // pred_fallthru
    _
  %v20 = vld [vmem:[%s0] sm:$0xff]
  %v21 = vld [vmem:[%s0 + $0x8] sm:$0xff]
  %v22 = vld [vmem:[%s1] sm:$0xff]
  %v23 = vld [vmem:[%s1 + $0x8] sm:$0xff]
  %v24 = vld [vmem:[%s1 + $0x10] sm:$0xff]
  %v25 = vld [vmem:[%s1 + $0x18] sm:$0xff]
  %v26 = vld [vmem:[%s2] sm:$0x1]
  %v28 = vperm.slane %v26, 0
  %vm30 = vcmask 261120
  %v32 = vsel %vm30, %v20, 0
  %v35 = vsel %vm30, %v21, 0
  %37 = vmatpush.msra.mxu0 0.0
  %38 = vmatpush.msra.mxu0 0.0
  %39 = vmatpush.msra.mxu0 0.0
  %40 = vmatpush.msra.mxu0 0.0
  %41 = vmatpush.msra.mxu0 0.0
  %42 = vmatpush.msra.mxu0 0.0
  %43 = vmatpush.msra.mxu0 0.0
  %44 = vmatpush.msra.mxu0 0.0
  %45 = vmatpush.msra.mxu0 0.0
  %46 = vmatpush.msra.mxu0 0.0
  %47 = vmatpush.msra.mxu0 0.0
  %48 = vmatpush.msra.mxu0 0.0
  %49 = vmatpush.msra.mxu0 %v25
  %50 = vmatpush.msra.mxu0 %v24
  %51 = vmatpush.msra.mxu0 %v23
  %52 = vmatpush.msra.mxu0 %v22
  %53 = vmatmul.f32.gmra.mxu0 %v32
  %v54 = vpop.f32.mrf.mxu0
  %v55 = vadd.f32 %v28, %v54
  %56 = vmatmul.f32.gmra.mxu0 %v35
  %v57 = vpop.f32.mrf.mxu0
  %v58 = vadd.f32 %v28, %v57
  %59 = vdwg.mxu0
  %vm60 = vcmask 64512
  %61 = vst.msk [vmem:[%s4] sm:$0xff] %vm60, %v55
  %62 = vst.msk [vmem:[%s4 + $0x8] sm:$0xff] %vm60, %v58
  %v63 = vsel %vm60, %v55, -inf
  %64 = vmax.xlane.f32.xlu0 %v63
  %v65 = vpop.xlane.xlu0 %64
  %v66 = vsel %vm60, %v58, -inf
  %67 = vmax.xlane.f32.xlu0 %v66
  %v68 = vpop.xlane.xlu0 %67
  %v69 = vsub.f32 %v55, %v65
  %v70 = vsub.f32 %v58, %v68
  %v71 = vmul.f32 %v69, 1.442695
  %v72 = vpow.pop %v71
  %v73 = vmul.f32 %v70, 1.442695
  %v74 = vpow.pop %v73
  %v75 = vsel %vm60, %v72, 0.0
  %76 = vadd.xlane.f32.xlu0 %v75
  %v77 = vpop.xlane.xlu0 %76
  %v78 = vsel %vm60, %v74, 0.0
  %79 = vadd.xlane.f32.xlu0 %v78
  %v80 = vpop.xlane.xlu0 %79
  %v81 = vrcp.pop %v77
  %v82 = vrcp.pop %v80
  %v83 = vmul.f32 %v72, %v81
  %v84 = vmul.f32 %v74, %v82
  %85 = vst.msk [vmem:[%s5] sm:$0xff] %vm60, %v83
  %86 = vst.msk [vmem:[%s5 + $0x8] sm:$0xff] %vm60, %v84
  %v87 = vld [vmem:[%s3] sm:$0xff]
  %v88 = vld [vmem:[%s3 + $0x8] sm:$0xff]
  %v89 = vadd.f32 %v87, 1e-20
  %v90 = vadd.f32 %v88, 1e-20
  %v91 = vlog2.pop %v89
  %v92 = vmul.f32 %v91, 0.6931472
  %v93 = vlog2.pop %v90
  %v94 = vmul.f32 %v93, 0.6931472
  %v95 = vsub.f32 0.0, %v92
  %v96 = vsub.f32 0.0, %v94
  %v97 = vadd.f32 %v95, 1e-20
  %v98 = vadd.f32 %v96, 1e-20
  %v99 = vlog2.pop %v97
  %v100 = vmul.f32 %v99, 0.6931472
  %v101 = vlog2.pop %v98
  %v102 = vmul.f32 %v101, 0.6931472
  %v103 = vsub.f32 0.0, %v100
  %v104 = vsub.f32 0.0, %v102
  %v105 = vadd.f32 %v55, %v103
  %v106 = vadd.f32 %v58, %v104
  %v107 = vsel %vm60, %v105, -inf
  %108 = vmax.xlane.f32.xlu0 %v107
  %v109 = vpop.xlane.xlu0 %108
  %v110 = vsel %vm60, %v106, -inf
  %111 = vmax.xlane.f32.xlu0 %v110
  %v112 = vpop.xlane.xlu0 %111
  %v113 = vsub.f32 %v105, %v109
  %v114 = vsub.f32 %v106, %v112
  %v115 = vmul.f32 %v113, 1.442695
  %v116 = vpow.pop %v115
  %v117 = vmul.f32 %v114, 1.442695
  %v118 = vpow.pop %v117
  %v119 = vsel %vm60, %v116, 0.0
  %120 = vadd.xlane.f32.xlu0 %v119
  %v121 = vpop.xlane.xlu0 %120
  %v122 = vsel %vm60, %v118, 0.0
  %123 = vadd.xlane.f32.xlu0 %v122
  %v124 = vpop.xlane.xlu0 %123
  %v125 = vrcp.pop %v121
  %v126 = vrcp.pop %v124
  %v127 = vmul.f32 %v116, %v125
  %v128 = vmul.f32 %v118, %v126
  %129 = vst.msk [vmem:[%s6] sm:$0xff] %vm60, %v127
  %130 = vst.msk [vmem:[%s6 + $0x8] sm:$0xff] %vm60, %v128
  // Predicated region
  $region18: #{tpu_custom_call.1} parent=0 // pred_check
    _
  $region19: #{tpu_custom_call.1} parent=0 // pred_check_branch
    %132 = sbr.rel (0) target = $region21
  $region20: #{tpu_custom_call.1} parent=0 // pred_region
    _
  $region21: #{tpu_custom_call.1} parent=0 // pred_fallthru
    _
  // Predicated region
  $region22: #{tpu_custom_call.1} parent=0 // pred_check
    _
  $region23: #{tpu_custom_call.1} parent=0 // pred_check_branch
    %134 = sbr.rel (0) target = $region25
  $region24: #{tpu_custom_call.1} parent=0 // pred_region
    _
  $region25: #{tpu_custom_call.1} parent=0 // pred_fallthru
    _
  // Predicated region
  $region26: #{tpu_custom_call.1} parent=0 // pred_check
    _
  $region27: #{tpu_custom_call.1} parent=0 // pred_check_branch
    %136 = sbr.rel (0) target = $region29
  $region28: #{tpu_custom_call.1} parent=0 // pred_region
    _
  $region29: #{tpu_custom_call.1} parent=0 // pred_fallthru
    _
  // Predicated region
  $region30: #{tpu_custom_call.1} parent=0 // pred_check
    _
  $region31: #{tpu_custom_call.1} parent=0 // pred_check_branch
    %138 = sbr.rel (0) target = $region33
  $region32: #{tpu_custom_call.1} parent=0 // pred_region
    _
  $region33: #{tpu_custom_call.1} parent=0 // pred_fallthru
    _
  // Predicated region
  $region34: #{tpu_custom_call.1} parent=0 // pred_check
    _
  $region35: #{tpu_custom_call.1} parent=0 // pred_check_branch
    %140 = sbr.rel (0) target = $region37
  $region36: #{tpu_custom_call.1} parent=0 // pred_region
    _
  $region37: #{tpu_custom_call.1} parent=0 // pred_fallthru
    _
  // Predicated region
  $region38: #{tpu_custom_call.1} parent=0 // pred_check
    _
  $region39: #{tpu_custom_call.1} parent=0 // pred_check_branch
    %142 = sbr.rel (0) target = $region41
  $region40: #{tpu_custom_call.1} parent=0 // pred_region
    _
  $region41: #{tpu_custom_call.1} parent=0 // pred_fallthru
    _

</llo_original>
